<compile_context>
chip_gen: v6e
topology: v6e:2x2x1
jax: 0.10.0
libtpu: 0.0.40
codegen_flags: <defaults>
</compile_context>

<pallas_src>
import functools

import jax
import jax.numpy as jnp
from jax import lax
from jax.experimental import pallas as pl
from jax.experimental.pallas import tpu as pltpu

_LANES = 128
_SUBLANES = 8
_TILE_B = _LANES * _SUBLANES  # 1024 batch elements per grid step (one (8,128) slab per class)


def _cdiv(a, b):
    return -(-a // b)


def _recip(x):
    # EUP approximate reciprocal + one Newton-Raphson step (~f32 accurate),
    # keeps the softmax-denominator divide off the VALU critical path.
    r = pl.reciprocal(x, approx=True)
    return r * (2.0 - x * r)


def _make_kernel(n_class, b_true, n_steps, classifier, one_weight, softmax_first):
    C = n_class

    def kernel(eps_ref, x_ref, w_ref, out_ref):
        core = pl.program_id(0)
        step = pl.program_id(1)

        @pl.when(step == 0)
        def _init():
            out_ref[...] = jnp.zeros_like(out_ref)

        eps = eps_ref[0]

        # Input halves: (C, 8, 128) each; class axis is a major dim (one vreg
        # per class), batch fills the (sublane, lane) vreg exactly.
        x0 = x_ref[0].astype(jnp.float32)
        x1 = x_ref[1].astype(jnp.float32)

        # softmax(input, dim=1) over the full 2C axis, denominator rebuilt from
        # the two halves' exp-sums.
        zmax = jnp.maximum(jnp.max(x0, axis=0), jnp.max(x1, axis=0))       # (8,128)
        e0 = jnp.exp(x0 - zmax[None])
        e1 = jnp.exp(x1 - zmax[None])
        inv_denom = _recip(jnp.sum(e0, axis=0) + jnp.sum(e1, axis=0))[None]  # (1,8,128)

        e_sel = e1 if classifier == 'T' else e0
        prob_sel = e_sel * inv_denom                                       # (C,8,128)
        # Fused eps masking: temp[prob==0] = eps ; sel = prob + temp
        sel = jnp.where(prob_sel == 0.0, eps, prob_sel)

        # prob_weight (branch is static; matches the PyTorch if/else)
        if one_weight:
            w0 = w_ref[0].astype(jnp.float32)
            w1 = w_ref[1].astype(jnp.float32)
            if softmax_first:
                wmax = jnp.maximum(jnp.max(w0, axis=0), jnp.max(w1, axis=0))
                ew0 = jnp.exp(w0 - wmax[None])
                ew1 = jnp.exp(w1 - wmax[None])
                winv = _recip(jnp.sum(ew0, axis=0) + jnp.sum(ew1, axis=0))[None]
                prob_weight = (ew0 + ew1) * winv
            else:
                ws = w0 + w1
                wmax = jnp.max(ws, axis=0)
                ew = jnp.exp(ws - wmax[None])
                prob_weight = ew * _recip(jnp.sum(ew, axis=0))[None]
        else:
            # Only the needed half was DMA'd (block index chose the half).
            wz = w_ref[0].astype(jnp.float32)                              # (C,8,128)
            wmax = jnp.max(wz, axis=0)
            ew = jnp.exp(wz - wmax[None])
            prob_weight = ew * _recip(jnp.sum(ew, axis=0))[None]

        # Per-batch-lane loss, fully lane/sublane dense.
        loss = -jnp.sum(prob_weight * jnp.log(sel), axis=0)                # (8,128)

        # Mask padded batch lanes (B not a multiple of the tile).
        base = (core * n_steps + step) * _TILE_B
        sub = lax.broadcasted_iota(jnp.int32, (_SUBLANES, _LANES), 0)
        lane = lax.broadcasted_iota(jnp.int32, (_SUBLANES, _LANES), 1)
        gidx = base + sub * _LANES + lane
        loss = jnp.where(gidx < b_true, loss, 0.0)

        out_ref[...] += loss

    return kernel


@functools.partial(
    jax.jit,
    static_argnames=("n_class", "consistent", "classifier", "one_weight", "softmax_first"),
)
def interaction_loss_on_target(
    inp,
    weight,
    eps,
    n_class=10,
    consistent=False,
    classifier='T',
    one_weight=False,
    softmax_first=True,
):
    assert classifier in ('T', 'S')
    B, D = inp.shape
    C = n_class
    assert D == 2 * C and weight.shape == (B, D)

    # Which half of `weight` is needed when one_weight=False.
    if classifier == 'T':
        w_half = 1 if consistent else 0
    else:
        w_half = 0 if consistent else 1

    # --- host-side layout plumbing: batch -> (sublane, lane), class -> major ---
    n_tiles = max(1, _cdiv(B, _TILE_B))
    n_cores = 2 if n_tiles >= 2 else 1          # v7x: 2 TCs; harmless elsewhere
    n_steps = _cdiv(n_tiles, n_cores)
    b_pad = n_cores * n_steps * _TILE_B

    def to_tiles(a):
        a = a.astype(jnp.float32).reshape(B, 2, C).transpose(1, 2, 0)     # (2, C, B)
        if b_pad != B:
            a = jnp.pad(a, ((0, 0), (0, 0), (0, b_pad - B)))
        return a.reshape(2, C, b_pad // _LANES, _LANES)                   # (2, C, b_pad/128, 128)

    x4 = to_tiles(inp)
    w4 = to_tiles(weight)
    eps_arr = jnp.asarray(eps, dtype=jnp.float32).reshape((1,))

    x_spec = pl.BlockSpec((2, C, _SUBLANES, _LANES),
                          lambda c, s: (0, 0, c * n_steps + s, 0))
    if one_weight:
        w_spec = pl.BlockSpec((2, C, _SUBLANES, _LANES),
                              lambda c, s: (0, 0, c * n_steps + s, 0))
    else:
        w_spec = pl.BlockSpec((1, C, _SUBLANES, _LANES),
                              lambda c, s: (w_half, 0, c * n_steps + s, 0))
    out_spec = pl.BlockSpec((_SUBLANES, _LANES), lambda c, s: (c, 0))

    kernel = _make_kernel(C, B, n_steps, classifier, one_weight, softmax_first)

    w_bytes = x4.size * 4 if one_weight else (x4.size // 2) * 4
    cost = pl.CostEstimate(
        flops=10 * B * C,
        transcendentals=B * (2 * C + (2 * C if one_weight else C) + C),
        bytes_accessed=x4.size * 4 + w_bytes + n_cores * _SUBLANES * _LANES * 4,
    )

    # Double-buffered input blocks + small headroom; clamped for v7x (64 MiB).
    blocks_bytes = (2 * C + (2 * C if one_weight else C)) * _TILE_B * 4
    vmem_limit = int(min(max(2 * blocks_bytes + (4 << 20), 32 << 20), 96 << 20))

    partial = pl.pallas_call(
        kernel,
        out_shape=jax.ShapeDtypeStruct((n_cores * _SUBLANES, _LANES), jnp.float32),
        grid=(n_cores, n_steps),
        in_specs=[
            pl.BlockSpec(memory_space=pltpu.MemorySpace.SMEM),  # eps scalar
            x_spec,
            w_spec,
        ],
        out_specs=out_spec,
        compiler_params=pltpu.CompilerParams(
            dimension_semantics=("parallel", "arbitrary"),
            vmem_limit_bytes=vmem_limit,
        ),
        cost_estimate=cost,
    )(eps_arr, x4, w4)

    # PyTorch `.mean()` over the batch; return shape [1].
    return (jnp.sum(partial) / B).reshape((1,))


def _reference(inp, weight, eps, n_class, consistent, classifier, one_weight, softmax_first):
    prob_input = jax.nn.softmax(inp, axis=1)
    temp = jnp.where(prob_input == 0.0, eps, 0.0)
    C = n_class
    if one_weight:
        if softmax_first:
            pwt = jax.nn.softmax(weight, axis=1)
            prob_weight = pwt[:, :C] + pwt[:, C:]
        else:
            prob_weight = jax.nn.softmax(weight[:, :C] + weight[:, C:], axis=1)
        sel = (prob_input[:, C:] + temp[:, C:]) if classifier == 'T' else (prob_input[:, :C] + temp[:, :C])
    elif not consistent:
        if classifier == 'T':
            prob_weight = jax.nn.softmax(weight[:, :C], axis=1)
            sel = prob_input[:, C:] + temp[:, C:]
        else:
            prob_weight = jax.nn.softmax(weight[:, C:], axis=1)
            sel = prob_input[:, :C] + temp[:, :C]
    else:
        if classifier == 'T':
            prob_weight = jax.nn.softmax(weight[:, C:], axis=1)
            sel = prob_input[:, C:] + temp[:, C:]
        else:
            prob_weight = jax.nn.softmax(weight[:, :C], axis=1)
            sel = prob_input[:, :C] + temp[:, :C]
    return -(prob_weight * jnp.log(sel)).sum(1).mean()


if __name__ == "__main__":
    import numpy as np

    n_class = 10
    eps = 1e-6
    key = jax.random.PRNGKey(0)

    configs = [
        dict(consistent=False, classifier='T', one_weight=False, softmax_first=True),
        dict(consistent=False, classifier='S', one_weight=False, softmax_first=True),
        dict(consistent=True,  classifier='T', one_weight=False, softmax_first=True),
        dict(consistent=True,  classifier='S', one_weight=False, softmax_first=True),
        dict(consistent=False, classifier='T', one_weight=True,  softmax_first=True),
        dict(consistent=False, classifier='S', one_weight=True,  softmax_first=False),
    ]

    ok = True

    # Small batch (single tile, heavy masking).
    k1, k2 = jax.random.split(key)
    B = 8
    inp = jax.random.normal(k1, (B, 2 * n_class), dtype=jnp.float32)
    weight = jax.random.normal(k2, (B, 2 * n_class), dtype=jnp.float32)
    for cfg in configs:
        loss = jax.block_until_ready(
            interaction_loss_on_target(inp, weight, eps, n_class=n_class, **cfg))
        ref = _reference(inp, weight, eps, n_class, **cfg)
        if not np.allclose(np.asarray(loss)[0], np.asarray(ref), rtol=1e-5, atol=1e-5):
            ok = False
            print("MISMATCH(B=8)", cfg, float(loss[0]), float(ref))

    # Larger batch: exercises multi-tile streaming, 2-core split and lane masking.
    k3, k4 = jax.random.split(k2)
    B = 2500
    inp = jax.random.normal(k3, (B, 2 * n_class), dtype=jnp.float32)
    weight = jax.random.normal(k4, (B, 2 * n_class), dtype=jnp.float32)
    for cfg in (configs[0], configs[4]):
        loss = jax.block_until_ready(
            interaction_loss_on_target(inp, weight, eps, n_class=n_class, **cfg))
        ref = _reference(inp, weight, eps, n_class, **cfg)
        if not np.allclose(np.asarray(loss)[0], np.asarray(ref), rtol=1e-5, atol=1e-5):
            ok = False
            print("MISMATCH(B=2500)", cfg, float(loss[0]), float(ref))

    if ok:
        print("KERNEL_OK")
</pallas_src>

<mosaic_0001>
module attributes {stable_mosaic.version = 11 : i64} {
  func.func @kernel(%arg0: i32, %arg1: i32, %arg2: memref<1xf32, #tpu.memory_space<smem>>, %arg3: memref<2x10x8x128xf32, #tpu.memory_space<vmem>>, %arg4: memref<1x10x8x128xf32, #tpu.memory_space<vmem>>, %arg5: memref<8x128xf32, #tpu.memory_space<vmem>>) attributes {dimension_semantics = [#tpu.dimension_semantics<parallel>, #tpu.dimension_semantics<arbitrary>], iteration_bounds = array<i64: 1, 1>, scalar_prefetch = 0 : i64, scratch_operands = 0 : i64, tpu.core_type = #tpu.core_type<tc>, window_params = [{transform_indices = @transform_0, window_bounds = array<i64: 1>}, {transform_indices = @transform_1, window_bounds = array<i64: 2, 10, 8, 128>}, {transform_indices = @transform_2, window_bounds = array<i64: 1, 10, 8, 128>}, {transform_indices = @transform_3, window_bounds = array<i64: 8, 128>}]} {
    %c0_i32 = arith.constant 0 : i32
    %0 = arith.cmpi eq, %arg1, %c0_i32 : i32
    %1 = arith.extui %0 : i1 to i32
    %c0_i32_0 = arith.constant 0 : i32
    %2 = arith.cmpi ne, %1, %c0_i32_0 : i32
    scf.if %2 {
      %cst_27 = arith.constant 0.000000e+00 : f32
      %72 = vector.broadcast %cst_27 : f32 to vector<8x128xf32>
      %c0_28 = arith.constant 0 : index
      %c0_29 = arith.constant 0 : index
      %73 = vector.load %arg5[%c0_28, %c0_29] : memref<8x128xf32, #tpu.memory_space<vmem>>, vector<8x128xf32>
      tpu.vector_store %arg5[%c0_28, %c0_29], %72 {strides = array<i32>} : memref<8x128xf32, #tpu.memory_space<vmem>>, vector<8x128xf32>,
    } else {
    }
    %c0 = arith.constant 0 : index
    %3 = memref.load %arg2[%c0] : memref<1xf32, #tpu.memory_space<smem>>
    %c0_1 = arith.constant 0 : index
    %c0_2 = arith.constant 0 : index
    %c0_3 = arith.constant 0 : index
    %c0_4 = arith.constant 0 : index
    %4 = vector.load %arg3[%c0_1, %c0_2, %c0_3, %c0_4] : memref<2x10x8x128xf32, #tpu.memory_space<vmem>>, vector<1x10x8x128xf32>
    %5 = vector.shape_cast %4 : vector<1x10x8x128xf32> to vector<10x8x128xf32>
    %c1 = arith.constant 1 : index
    %c0_5 = arith.constant 0 : index
    %c0_6 = arith.constant 0 : index
    %c0_7 = arith.constant 0 : index
    %6 = vector.load %arg3[%c1, %c0_5, %c0_6, %c0_7] : memref<2x10x8x128xf32, #tpu.memory_space<vmem>>, vector<1x10x8x128xf32>
    %7 = vector.shape_cast %6 : vector<1x10x8x128xf32> to vector<10x8x128xf32>
    %cst = arith.constant dense<0xFF800000> : vector<8x128xf32>
    %8 = vector.multi_reduction <maximumf>, %5, %cst [0] : vector<10x8x128xf32> to vector<8x128xf32>
    %cst_8 = arith.constant dense<0xFF800000> : vector<8x128xf32>
    %9 = vector.multi_reduction <maximumf>, %7, %cst_8 [0] : vector<10x8x128xf32> to vector<8x128xf32>
    %10 = arith.maximumf %8, %9 : vector<8x128xf32>
    %11 = vector.shape_cast %10 : vector<8x128xf32> to vector<1x8x128xf32>
    %12 = vector.broadcast %11 : vector<1x8x128xf32> to vector<10x8x128xf32>
    %13 = arith.subf %5, %12 : vector<10x8x128xf32>
    %14 = math.exp %13 : vector<10x8x128xf32>
    %15 = vector.shape_cast %10 : vector<8x128xf32> to vector<1x8x128xf32>
    %16 = vector.broadcast %15 : vector<1x8x128xf32> to vector<10x8x128xf32>
    %17 = arith.subf %7, %16 : vector<10x8x128xf32>
    %18 = math.exp %17 : vector<10x8x128xf32>
    %cst_9 = arith.constant dense<0.000000e+00> : vector<8x128xf32>
    %19 = vector.multi_reduction <add>, %14, %cst_9 [0] : vector<10x8x128xf32> to vector<8x128xf32>
    %cst_10 = arith.constant dense<0.000000e+00> : vector<8x128xf32>
    %20 = vector.multi_reduction <add>, %18, %cst_10 [0] : vector<10x8x128xf32> to vector<8x128xf32>
    %21 = arith.addf %19, %20 : vector<8x128xf32>
    %22 = tpu.reciprocal %21 {approx = true} : vector<8x128xf32> -> vector<8x128xf32>
    %23 = arith.mulf %21, %22 : vector<8x128xf32>
    %cst_11 = arith.constant 2.000000e+00 : f32
    %24 = vector.broadcast %cst_11 : f32 to vector<8x128xf32>
    %25 = arith.subf %24, %23 : vector<8x128xf32>
    %26 = arith.mulf %22, %25 : vector<8x128xf32>
    %27 = vector.shape_cast %26 : vector<8x128xf32> to vector<1x8x128xf32>
    %28 = vector.broadcast %27 : vector<1x8x128xf32> to vector<10x8x128xf32>
    %29 = arith.mulf %18, %28 : vector<10x8x128xf32>
    %cst_12 = arith.constant 0.000000e+00 : f32
    %30 = vector.broadcast %cst_12 : f32 to vector<10x8x128xf32>
    %31 = arith.cmpf oeq, %29, %30 : vector<10x8x128xf32>
    %32 = vector.broadcast %3 : f32 to vector<10x8x128xf32>
    %33 = arith.select %31, %32, %29 : vector<10x8x128xi1>, vector<10x8x128xf32>
    %c0_13 = arith.constant 0 : index
    %c0_14 = arith.constant 0 : index
    %c0_15 = arith.constant 0 : index
    %c0_16 = arith.constant 0 : index
    %34 = vector.load %arg4[%c0_13, %c0_14, %c0_15, %c0_16] : memref<1x10x8x128xf32, #tpu.memory_space<vmem>>, vector<1x10x8x128xf32>
    %35 = vector.shape_cast %34 : vector<1x10x8x128xf32> to vector<10x8x128xf32>
    %cst_17 = arith.constant dense<0xFF800000> : vector<8x128xf32>
    %36 = vector.multi_reduction <maximumf>, %35, %cst_17 [0] : vector<10x8x128xf32> to vector<8x128xf32>
    %37 = vector.shape_cast %36 : vector<8x128xf32> to vector<1x8x128xf32>
    %38 = vector.broadcast %37 : vector<1x8x128xf32> to vector<10x8x128xf32>
    %39 = arith.subf %35, %38 : vector<10x8x128xf32>
    %40 = math.exp %39 : vector<10x8x128xf32>
    %cst_18 = arith.constant dense<0.000000e+00> : vector<8x128xf32>
    %41 = vector.multi_reduction <add>, %40, %cst_18 [0] : vector<10x8x128xf32> to vector<8x128xf32>
    %42 = tpu.reciprocal %41 {approx = true} : vector<8x128xf32> -> vector<8x128xf32>
    %43 = arith.mulf %41, %42 : vector<8x128xf32>
    %cst_19 = arith.constant 2.000000e+00 : f32
    %44 = vector.broadcast %cst_19 : f32 to vector<8x128xf32>
    %45 = arith.subf %44, %43 : vector<8x128xf32>
    %46 = arith.mulf %42, %45 : vector<8x128xf32>
    %47 = vector.shape_cast %46 : vector<8x128xf32> to vector<1x8x128xf32>
    %48 = vector.broadcast %47 : vector<1x8x128xf32> to vector<10x8x128xf32>
    %49 = arith.mulf %40, %48 : vector<10x8x128xf32>
    %50 = math.log %33 : vector<10x8x128xf32>
    %51 = arith.mulf %49, %50 : vector<10x8x128xf32>
    %cst_20 = arith.constant dense<0.000000e+00> : vector<8x128xf32>
    %52 = vector.multi_reduction <add>, %51, %cst_20 [0] : vector<10x8x128xf32> to vector<8x128xf32>
    %cst_21 = arith.constant 0.000000e+00 : f32
    %53 = vector.broadcast %cst_21 : f32 to vector<8x128xf32>
    %54 = arith.subf %53, %52 : vector<8x128xf32>
    %c1_i32 = arith.constant 1 : i32
    %55 = arith.muli %arg0, %c1_i32 : i32
    %56 = arith.addi %55, %arg1 : i32
    %c1024_i32 = arith.constant 1024 : i32
    %57 = arith.muli %56, %c1024_i32 : i32
    %58 = tpu.iota {dimensions = array<i32: 0>} : vector<8x128xi32>
    %59 = tpu.iota {dimensions = array<i32: 1>} : vector<8x128xi32>
    %c128_i32 = arith.constant 128 : i32
    %60 = vector.broadcast %c128_i32 : i32 to vector<8x128xi32>
    %61 = arith.muli %58, %60 : vector<8x128xi32>
    %62 = vector.broadcast %57 : i32 to vector<8x128xi32>
    %63 = arith.addi %62, %61 : vector<8x128xi32>
    %64 = arith.addi %63, %59 : vector<8x128xi32>
    %c8_i32 = arith.constant 8 : i32
    %65 = vector.broadcast %c8_i32 : i32 to vector<8x128xi32>
    %66 = arith.cmpi slt, %64, %65 : vector<8x128xi32>
    %cst_22 = arith.constant 0.000000e+00 : f32
    %67 = vector.broadcast %cst_22 : f32 to vector<8x128xf32>
    %68 = arith.select %66, %54, %67 : vector<8x128xi1>, vector<8x128xf32>
    %c0_23 = arith.constant 0 : index
    %c0_24 = arith.constant 0 : index
    %69 = vector.load %arg5[%c0_23, %c0_24] : memref<8x128xf32, #tpu.memory_space<vmem>>, vector<8x128xf32>
    %70 = arith.addf %69, %68 : vector<8x128xf32>
    %c0_25 = arith.constant 0 : index
    %c0_26 = arith.constant 0 : index
    %71 = vector.load %arg5[%c0_25, %c0_26] : memref<8x128xf32, #tpu.memory_space<vmem>>, vector<8x128xf32>
    tpu.vector_store %arg5[%c0_25, %c0_26], %70 {strides = array<i32>} : memref<8x128xf32, #tpu.memory_space<vmem>>, vector<8x128xf32>,
    return
  }
  func.func @transform_0(%arg0: i32, %arg1: i32) -> i32 {
    %c0_i32 = arith.constant 0 : i32
    %c0_i32_0 = arith.constant 0 : i32
    return %c0_i32 : i32
  }
  func.func @transform_1(%arg0: i32, %arg1: i32) -> (i32, i32, i32, i32) {
    %c1_i32 = arith.constant 1 : i32
    %0 = arith.muli %arg0, %c1_i32 : i32
    %1 = arith.addi %0, %arg1 : i32
    %c0_i32 = arith.constant 0 : i32
    %c0_i32_0 = arith.constant 0 : i32
    %c0_i32_1 = arith.constant 0 : i32
    %c0_i32_2 = arith.constant 0 : i32
    return %c0_i32, %c0_i32_0, %1, %c0_i32_1 : i32, i32, i32, i32
  }
  func.func @transform_2(%arg0: i32, %arg1: i32) -> (i32, i32, i32, i32) {
    %c1_i32 = arith.constant 1 : i32
    %0 = arith.muli %arg0, %c1_i32 : i32
    %1 = arith.addi %0, %arg1 : i32
    %c0_i32 = arith.constant 0 : i32
    %c0_i32_0 = arith.constant 0 : i32
    %c0_i32_1 = arith.constant 0 : i32
    %c0_i32_2 = arith.constant 0 : i32
    return %c0_i32, %c0_i32_0, %1, %c0_i32_1 : i32, i32, i32, i32
  }
  func.func @transform_3(%arg0: i32, %arg1: i32) -> (i32, i32) {
    %c0_i32 = arith.constant 0 : i32
    %c0_i32_0 = arith.constant 0 : i32
    return %arg0, %c0_i32 : i32, i32
  }
}

</mosaic_0001>

<llo_original>
// kernel: interaction_loss_on_target.1
$region0: #{interaction_loss_on_target.1}
  #allocation0 [shape = 'u32[]', space=smem, size = 0x4, offset = 0x4, fixed_abs, tag = 'smem constant byte address 0x4 - core index']
  #allocation1 [shape = 'u32[144,128]{1,0:T(1,128)}', space=vmem, size = 0x12000, scoped, tag = 'internal scratch']
  #allocation2 [shape = 'f32[1]{0:T(128)S(6)}', space=smem, size = 0x200, scoped, tag = 'scoped memory for interaction_loss_on_target.1']
  %s0 = inlined_call_operand.<no memory space> [shape: f32[1], index: 0, kind: input, shape index: {}]
  %s1 = inlined_call_operand.vmem [shape: f32[2,10,8,128], index: 1, kind: input, shape index: {}]
  %s2 = inlined_call_operand.vmem [shape: f32[2,10,8,128], index: 2, kind: input, shape index: {}]
  %s3 = inlined_call_operand.vmem [shape: f32[8,128], index: 3, kind: output, shape index: {}]
  %s4 = sld [smem:[#allocation0]]
  $region26: #{interaction_loss_on_target.1} parent=0
    _
  %s6 = ssub.s32 1, %s4
  %s7 = scalar_select 0, %s6, %s4
  %8 = sst [smem:[#allocation2]] %s0
  // Predicated region
  $region2: #{interaction_loss_on_target.1} parent=0 // pred_check
    _
  $region3: #{interaction_loss_on_target.1} parent=0 // pred_check_branch
    %10 = sbr.rel (0) target = $region5
  $region4: #{interaction_loss_on_target.1} parent=0 // pred_region
    _
  $region5: #{interaction_loss_on_target.1} parent=0 // pred_fallthru
    _
  // Predicated region
  $region6: #{interaction_loss_on_target.1} parent=0 // pred_check
    _
  $region7: #{interaction_loss_on_target.1} parent=0 // pred_check_branch
    %12 = sbr.rel (0) target = $region9
  $region8: #{interaction_loss_on_target.1} parent=0 // pred_region
    %s13 = sadd.s32 0, 0
    %p14 = scmp.lt.s32.totalorder %s13, 0
    %s15 = scalar_select %p14, %s13, 0
    %s16 = smul.addr %s15, 8
    %s17 = scalar_lea.vmem %s1, %s16
    %s18 = sadd.s32 0, 0
  $region9: #{interaction_loss_on_target.1} parent=0 // pred_fallthru
    _
  // Predicated region
  $region10: #{interaction_loss_on_target.1} parent=0 // pred_check
    _
  $region11: #{interaction_loss_on_target.1} parent=0 // pred_check_branch
    %20 = sbr.rel (0) target = $region13
  $region12: #{interaction_loss_on_target.1} parent=0 // pred_region
    %s21 = sadd.s32 0, 0
    %p22 = scmp.lt.s32.totalorder %s21, 0
    %s23 = scalar_select %p22, %s21, 0
    %s24 = smul.addr %s23, 8
    %s25 = scalar_lea.vmem %s2, %s24
    %s26 = sadd.s32 0, 0
  $region13: #{interaction_loss_on_target.1} parent=0 // pred_fallthru
    _
  %s27 = sadd.s32 0, 0
  %p28 = scmp.lt.s32.totalorder %s27, 0
  %s29 = scalar_select %p28, %s27, 0
  %s30 = smul.addr %s29, 8
  %s31 = scalar_lea.vmem %s1, %s30
  %s32 = sadd.s32 0, 0
  %p33 = scmp.lt.s32.totalorder %s32, 0
  %s34 = scalar_select %p33, %s32, 0
  %s35 = smul.addr %s34, 8
  %s36 = scalar_lea.vmem %s2, %s35
  %s37 = sadd.s32 0, 0
  %p38 = scmp.lt.s32.totalorder %s37, 0
  %s39 = scalar_select %p38, %s37, 0
  %s40 = smul.addr %s39, 8
  %s41 = scalar_lea.vmem %s1, %s40
  %s42 = sadd.s32 0, 0
  %s43 = sadd.s32 0, 0
  %p44 = scmp.lt.s32.totalorder %s43, 0
  %s45 = scalar_select %p44, %s43, 0
  %s46 = smul.addr %s45, 8
  %s47 = scalar_lea.vmem %s2, %s46
  %s48 = sadd.s32 0, 0
  %p49 = scmp.eq.s32.totalorder 0, 0
  // Predicated region
  $region14: #{interaction_loss_on_target.1} parent=0 // pred_check
    %p50 = pneg %p49
  $region15: #{interaction_loss_on_target.1} parent=0 // pred_check_branch
    %52 = sbr.rel (%p50) target = $region17
  $region16: #{interaction_loss_on_target.1} parent=0 // pred_region
    %53 = vst [vmem:[%s3] sm:$0xff] 0.0
  $region17: #{interaction_loss_on_target.1} parent=0 // pred_fallthru
    _
  %s54 = sld [smem:[#allocation2]]
  %v55 = vld [vmem:[%s41] sm:$0xff]
  %v56 = vld [vmem:[%s41 + $0x8] sm:$0xff]
  %v57 = vld [vmem:[%s41 + $0x10] sm:$0xff]
  %v58 = vld [vmem:[%s41 + $0x18] sm:$0xff]
  %v59 = vld [vmem:[%s41 + $0x20] sm:$0xff]
  %v60 = vld [vmem:[%s41 + $0x28] sm:$0xff]
  %v61 = vld [vmem:[%s41 + $0x30] sm:$0xff]
  %v62 = vld [vmem:[%s41 + $0x38] sm:$0xff]
  %v63 = vld [vmem:[%s41 + $0x40] sm:$0xff]
  %v64 = vld [vmem:[%s41 + $0x48] sm:$0xff]
  %s65 = scalar_lea.vmem %s41, 80
  %v66 = vld [vmem:[%s65] sm:$0xff]
  %v67 = vld [vmem:[%s65 + $0x8] sm:$0xff]
  %v68 = vld [vmem:[%s65 + $0x10] sm:$0xff]
  %v69 = vld [vmem:[%s65 + $0x18] sm:$0xff]
  %v70 = vld [vmem:[%s65 + $0x20] sm:$0xff]
  %v71 = vld [vmem:[%s65 + $0x28] sm:$0xff]
  %v72 = vld [vmem:[%s65 + $0x30] sm:$0xff]
  %v73 = vld [vmem:[%s65 + $0x38] sm:$0xff]
  %v74 = vld [vmem:[%s65 + $0x40] sm:$0xff]
  %v75 = vld [vmem:[%s65 + $0x48] sm:$0xff]
  %v76 = vmax.f32 %v55, %v59
  %v77 = vmax.f32 %v56, %v60
  %v78 = vmax.f32 %v57, %v61
  %v79 = vmax.f32 %v58, %v62
  %v80 = vmax.f32 %v76, %v63
  %v81 = vmax.f32 %v77, %v64
  %v82 = vmax.f32 %v80, %v81
  %v83 = vmax.f32 %v78, %v79
  %v84 = vmax.f32 %v82, %v83
  %v85 = vmax.f32 %v66, %v70
  %v86 = vmax.f32 %v67, %v71
  %v87 = vmax.f32 %v68, %v72
  %v88 = vmax.f32 %v69, %v73
  %v89 = vmax.f32 %v85, %v74
  %v90 = vmax.f32 %v86, %v75
  %v91 = vmax.f32 %v89, %v90
  %v92 = vmax.f32 %v87, %v88
  %v93 = vmax.f32 %v91, %v92
  %v94 = vmax.f32 %v84, %v93
  %v95 = vsub.f32 %v55, %v94
  %v96 = vsub.f32 %v56, %v94
  %v97 = vsub.f32 %v57, %v94
  %v98 = vsub.f32 %v58, %v94
  %v99 = vsub.f32 %v59, %v94
  %v100 = vsub.f32 %v60, %v94
  %v101 = vsub.f32 %v61, %v94
  %v102 = vsub.f32 %v62, %v94
  %v103 = vsub.f32 %v63, %v94
  %v104 = vsub.f32 %v64, %v94
  %v105 = vmul.f32 %v95, 1.442695
  %v106 = vpow.pop %v105
  %v107 = vmul.f32 %v96, 1.442695
  %v108 = vpow.pop %v107
  %v109 = vmul.f32 %v97, 1.442695
  %v110 = vpow.pop %v109
  %v111 = vmul.f32 %v98, 1.442695
  %v112 = vpow.pop %v111
  %v113 = vmul.f32 %v99, 1.442695
  %v114 = vpow.pop %v113
  %v115 = vmul.f32 %v100, 1.442695
  %v116 = vpow.pop %v115
  %v117 = vmul.f32 %v101, 1.442695
  %v118 = vpow.pop %v117
  %v119 = vmul.f32 %v102, 1.442695
  %v120 = vpow.pop %v119
  %v121 = vmul.f32 %v103, 1.442695
  %v122 = vpow.pop %v121
  %v123 = vmul.f32 %v104, 1.442695
  %v124 = vpow.pop %v123
  %v125 = vsub.f32 %v66, %v94
  %v126 = vsub.f32 %v67, %v94
  %v127 = vsub.f32 %v68, %v94
  %v128 = vsub.f32 %v69, %v94
  %v129 = vsub.f32 %v70, %v94
  %v130 = vsub.f32 %v71, %v94
  %v131 = vsub.f32 %v72, %v94
  %v132 = vsub.f32 %v73, %v94
  %v133 = vsub.f32 %v74, %v94
  %v134 = vsub.f32 %v75, %v94
  %v135 = vmul.f32 %v125, 1.442695
  %v136 = vpow.pop %v135
  %v137 = vmul.f32 %v126, 1.442695
  %v138 = vpow.pop %v137
  %v139 = vmul.f32 %v127, 1.442695
  %v140 = vpow.pop %v139
  %v141 = vmul.f32 %v128, 1.442695
  %v142 = vpow.pop %v141
  %v143 = vmul.f32 %v129, 1.442695
  %v144 = vpow.pop %v143
  %v145 = vmul.f32 %v130, 1.442695
  %v146 = vpow.pop %v145
  %v147 = vmul.f32 %v131, 1.442695
  %v148 = vpow.pop %v147
  %v149 = vmul.f32 %v132, 1.442695
  %v150 = vpow.pop %v149
  %v151 = vmul.f32 %v133, 1.442695
  %v152 = vpow.pop %v151
  %v153 = vmul.f32 %v134, 1.442695
  %v154 = vpow.pop %v153
  %v155 = vadd.f32 %v106, %v108
  %v156 = vadd.f32 %v155, %v110
  %v157 = vadd.f32 %v156, %v112
  %v158 = vadd.f32 %v157, %v114
  %v159 = vadd.f32 %v158, %v116
  %v160 = vadd.f32 %v159, %v118
  %v161 = vadd.f32 %v160, %v120
  %v162 = vadd.f32 %v161, %v122
  %v163 = vadd.f32 %v162, %v124
  %v164 = vadd.f32 %v136, %v138
  %v165 = vadd.f32 %v164, %v140
  %v166 = vadd.f32 %v165, %v142
  %v167 = vadd.f32 %v166, %v144
  %v168 = vadd.f32 %v167, %v146
  %v169 = vadd.f32 %v168, %v148
  %v170 = vadd.f32 %v169, %v150
  %v171 = vadd.f32 %v170, %v152
  %v172 = vadd.f32 %v171, %v154
  %v173 = vadd.f32 %v163, %v172
  %v174 = vrcp.pop %v173
  %v175 = vmul.f32 %v173, %v174
  %v176 = vsub.f32 2.0, %v175
  %v177 = vmul.f32 %v174, %v176
  %v178 = vmul.f32 %v136, %v177
  %v179 = vmul.f32 %v138, %v177
  %v180 = vmul.f32 %v140, %v177
  %v181 = vmul.f32 %v142, %v177
  %v182 = vmul.f32 %v144, %v177
  %v183 = vmul.f32 %v146, %v177
  %v184 = vmul.f32 %v148, %v177
  %v185 = vmul.f32 %v150, %v177
  %v186 = vmul.f32 %v152, %v177
  %v187 = vmul.f32 %v154, %v177
  %vm188 = vcmp.eq.f32.partialorder %v178, 0.0
  %vm189 = vcmp.eq.f32.partialorder %v179, 0.0
  %vm190 = vcmp.eq.f32.partialorder %v180, 0.0
  %vm191 = vcmp.eq.f32.partialorder %v181, 0.0
  %vm192 = vcmp.eq.f32.partialorder %v182, 0.0
  %vm193 = vcmp.eq.f32.partialorder %v183, 0.0
  %vm194 = vcmp.eq.f32.partialorder %v184, 0.0
  %vm195 = vcmp.eq.f32.partialorder %v185, 0.0
  %vm196 = vcmp.eq.f32.partialorder %v186, 0.0
  %vm197 = vcmp.eq.f32.partialorder %v187, 0.0
  %v198 = vstv %s54
  %v199 = vsel %vm188, %v198, %v178
  %v200 = vsel %vm189, %v198, %v179
  %v201 = vsel %vm190, %v198, %v180
  %v202 = vsel %vm191, %v198, %v181
  %v203 = vsel %vm192, %v198, %v182
  %v204 = vsel %vm193, %v198, %v183
  %v205 = vsel %vm194, %v198, %v184
  %v206 = vsel %vm195, %v198, %v185
  %v207 = vsel %vm196, %v198, %v186
  %v208 = vsel %vm197, %v198, %v187
  %v209 = vld [vmem:[%s47] sm:$0xff]
  %v210 = vld [vmem:[%s47 + $0x8] sm:$0xff]
  %v211 = vld [vmem:[%s47 + $0x10] sm:$0xff]
  %v212 = vld [vmem:[%s47 + $0x18] sm:$0xff]
  %v213 = vld [vmem:[%s47 + $0x20] sm:$0xff]
  %v214 = vld [vmem:[%s47 + $0x28] sm:$0xff]
  %v215 = vld [vmem:[%s47 + $0x30] sm:$0xff]
  %v216 = vld [vmem:[%s47 + $0x38] sm:$0xff]
  %v217 = vld [vmem:[%s47 + $0x40] sm:$0xff]
  %v218 = vld [vmem:[%s47 + $0x48] sm:$0xff]
  %v219 = vmax.f32 %v209, %v213
  %v220 = vmax.f32 %v210, %v214
  %v221 = vmax.f32 %v211, %v215
  %v222 = vmax.f32 %v212, %v216
  %v223 = vmax.f32 %v219, %v217
  %v224 = vmax.f32 %v220, %v218
  %v225 = vmax.f32 %v223, %v224
  %v226 = vmax.f32 %v221, %v222
  %v227 = vmax.f32 %v225, %v226
  %v228 = vsub.f32 %v209, %v227
  %v229 = vsub.f32 %v210, %v227
  %v230 = vsub.f32 %v211, %v227
  %v231 = vsub.f32 %v212, %v227
  %v232 = vsub.f32 %v213, %v227
  %v233 = vsub.f32 %v214, %v227
  %v234 = vsub.f32 %v215, %v227
  %v235 = vsub.f32 %v216, %v227
  %v236 = vsub.f32 %v217, %v227
  %v237 = vsub.f32 %v218, %v227
  %v238 = vmul.f32 %v228, 1.442695
  %v239 = vpow.pop %v238
  %v240 = vmul.f32 %v229, 1.442695
  %v241 = vpow.pop %v240
  %v242 = vmul.f32 %v230, 1.442695
  %v243 = vpow.pop %v242
  %v244 = vmul.f32 %v231, 1.442695
  %v245 = vpow.pop %v244
  %v246 = vmul.f32 %v232, 1.442695
  %v247 = vpow.pop %v246
  %v248 = vmul.f32 %v233, 1.442695
  %v249 = vpow.pop %v248
  %v250 = vmul.f32 %v234, 1.442695
  %v251 = vpow.pop %v250
  %v252 = vmul.f32 %v235, 1.442695
  %v253 = vpow.pop %v252
  %v254 = vmul.f32 %v236, 1.442695
  %v255 = vpow.pop %v254
  %v256 = vmul.f32 %v237, 1.442695
  %v257 = vpow.pop %v256
  %v258 = vadd.f32 %v239, %v241
  %v259 = vadd.f32 %v258, %v243
  %v260 = vadd.f32 %v259, %v245
  %v261 = vadd.f32 %v260, %v247
  %v262 = vadd.f32 %v261, %v249
  %v263 = vadd.f32 %v262, %v251
  %v264 = vadd.f32 %v263, %v253
  %v265 = vadd.f32 %v264, %v255
  %v266 = vadd.f32 %v265, %v257
  %v267 = vrcp.pop %v266
  %v268 = vmul.f32 %v266, %v267
  %v269 = vsub.f32 2.0, %v268
  %v270 = vmul.f32 %v267, %v269
  %v271 = vmul.f32 %v239, %v270
  %v272 = vmul.f32 %v241, %v270
  %v273 = vmul.f32 %v243, %v270
  %v274 = vmul.f32 %v245, %v270
  %v275 = vmul.f32 %v247, %v270
  %v276 = vmul.f32 %v249, %v270
  %v277 = vmul.f32 %v251, %v270
  %v278 = vmul.f32 %v253, %v270
  %v279 = vmul.f32 %v255, %v270
  %v280 = vmul.f32 %v257, %v270
  %v281 = vlog2.pop %v199
  %v282 = vmul.f32 %v281, 0.6931472
  %v283 = vlog2.pop %v200
  %v284 = vmul.f32 %v283, 0.6931472
  %v285 = vlog2.pop %v201
  %v286 = vmul.f32 %v285, 0.6931472
  %v287 = vlog2.pop %v202
  %v288 = vmul.f32 %v287, 0.6931472
  %v289 = vlog2.pop %v203
  %v290 = vmul.f32 %v289, 0.6931472
  %v291 = vlog2.pop %v204
  %v292 = vmul.f32 %v291, 0.6931472
  %v293 = vlog2.pop %v205
  %v294 = vmul.f32 %v293, 0.6931472
  %v295 = vlog2.pop %v206
  %v296 = vmul.f32 %v295, 0.6931472
  %v297 = vlog2.pop %v207
  %v298 = vmul.f32 %v297, 0.6931472
  %v299 = vlog2.pop %v208
  %v300 = vmul.f32 %v299, 0.6931472
  %v301 = vmul.f32 %v271, %v282
  %v302 = vmul.f32 %v272, %v284
  %v303 = vmul.f32 %v273, %v286
  %v304 = vmul.f32 %v274, %v288
  %v305 = vmul.f32 %v275, %v290
  %v306 = vmul.f32 %v276, %v292
  %v307 = vmul.f32 %v277, %v294
  %v308 = vmul.f32 %v278, %v296
  %v309 = vmul.f32 %v279, %v298
  %v310 = vmul.f32 %v280, %v300
  %v311 = vadd.f32 %v301, %v302
  %v312 = vadd.f32 %v311, %v303
  %v313 = vadd.f32 %v312, %v304
  %v314 = vadd.f32 %v313, %v305
  %v315 = vadd.f32 %v314, %v306
  %v316 = vadd.f32 %v315, %v307
  %v317 = vadd.f32 %v316, %v308
  %v318 = vadd.f32 %v317, %v309
  %v319 = vadd.f32 %v318, %v310
  %v320 = vsub.f32 0.0, %v319
  %s321 = sadd.s32 0, 0
  %s322 = smul.u32 %s321, 1024
  %v323 = vlaneseq
  %v324 = vshrl.u32 %v323, 7
  %v325 = vlaneseq
  %v326 = vand.u32 %v325, 127
  %v327 = vmul.u32 %v324, 128
  %v328 = vstv %s322
  %v329 = vadd.s32 %v328, %v327
  %v330 = vadd.s32 %v329, %v326
  %vm331 = vcmp.lt.s32.totalorder %v330, 8
  %v332 = vsel %vm331, %v320, 0.0
  %v333 = vld [vmem:[%s3] sm:$0xff]
  %v334 = vadd.f32 %v333, %v332
  %335 = vst [vmem:[%s3] sm:$0xff] %v334
  // Predicated region
  $region18: #{interaction_loss_on_target.1} parent=0 // pred_check
    _
  $region19: #{interaction_loss_on_target.1} parent=0 // pred_check_branch
    %337 = sbr.rel (0) target = $region21
  $region20: #{interaction_loss_on_target.1} parent=0 // pred_region
    _
  $region21: #{interaction_loss_on_target.1} parent=0 // pred_fallthru
    _
  // Predicated region
  $region22: #{interaction_loss_on_target.1} parent=0 // pred_check
    _
  $region23: #{interaction_loss_on_target.1} parent=0 // pred_check_branch
    %339 = sbr.rel (0) target = $region25
  $region24: #{interaction_loss_on_target.1} parent=0 // pred_region
    _
  $region25: #{interaction_loss_on_target.1} parent=0 // pred_fallthru
    _

</llo_original>
